<compile_context>
chip_gen: v5e
topology: v5e:2x2
jax: 0.10.0
libtpu: 0.0.40
codegen_flags: <defaults>
</compile_context>

<pallas_src>
import functools
from functools import partial

import jax
import jax.numpy as jnp
import numpy as np
from jax.experimental import pallas as pl
from jax.experimental.pallas import tpu as pltpu

_LANE = 128
_SUBLANE = 8


def _round_up(x, m):
    return ((x + m - 1) // m) * m


def _cdiv(a, b):
    return (a + b - 1) // b


@functools.lru_cache(maxsize=1)
def _vmem_capacity_bytes():
    """Per-TensorCore VMEM capacity; conservative fallback if the query fails."""
    try:
        return int(pltpu.get_tpu_info().vmem_capacity_bytes)
    except Exception:
        return 64 * 1024 * 1024  # v7x per-core size: safe lower bound


def _choose_tm(M, C, itemsize, budget_bytes, tm_max, pack, w_buffers):
    """Largest token tile (multiple of `pack`) whose VMEM working set fits.

    Also capped at ~M/2 so the 1-D parallel grid always has >= 2 steps and
    can be sharded across both TensorCores on v7x.
    """
    c_lane = _round_up(C, _LANE)                       # physical lane padding
    fixed = w_buffers * _round_up(C, _SUBLANE) * c_lane * itemsize   # weight
    fixed += w_buffers * _SUBLANE * c_lane * itemsize                # bias

    tm = min(_round_up(tm_max, pack),
             max(pack, _round_up(_cdiv(M, 2), pack)))

    def per_step(t):
        io_tiles = 4 * t * c_lane * itemsize    # 2x double-buffered in + out
        f32_tmp = 2 * t * c_lane * 4            # f32 matmul result + f32 skip
        return io_tiles + f32_tmp

    while tm > pack and fixed + per_step(tm) > budget_bytes:
        tm = max(pack, _round_up(tm // 2, pack))
    return tm


def _residual_kernel(gamma_ref, x_ref, w_ref, b_ref, o_ref, *, precision):
    """out = x + gamma * (x @ W + b) on one (tm, C) tile of tokens."""
    x = x_ref[...]                                            # (tm, C) model dtype
    h = jnp.dot(x, w_ref[...], precision=precision,
                preferred_element_type=jnp.float32)           # MXU, f32 accumulate
    h = h + b_ref[...].astype(jnp.float32)                    # broadcast (1, C)
    gamma = gamma_ref[0]                                      # f32 scalar from SMEM
    o_ref[...] = (x.astype(jnp.float32) + gamma * h).astype(o_ref.dtype)


@functools.lru_cache(maxsize=None)
def _build_residual_call(M, C, dtype, tm, vmem_limit_bytes, single_buffer_consts):
    dtype = np.dtype(dtype)
    precision = (jax.lax.Precision.HIGHEST if dtype == np.float32
                 else jax.lax.Precision.DEFAULT)
    kernel = partial(_residual_kernel, precision=precision)

    if single_buffer_consts:
        # Weight/bias block index never changes across the grid: a second
        # pipeline buffer would be dead VMEM.
        pm = pl.Buffered(1)
        w_spec = pl.BlockSpec((C, C), lambda i: (0, 0), pipeline_mode=pm)
        b_spec = pl.BlockSpec((1, C), lambda i: (0, 0), pipeline_mode=pm)
    else:
        w_spec = pl.BlockSpec((C, C), lambda i: (0, 0))
        b_spec = pl.BlockSpec((1, C), lambda i: (0, 0))

    return pl.pallas_call(
        kernel,
        out_shape=jax.ShapeDtypeStruct((M, C), dtype),
        grid=(_cdiv(M, tm),),
        in_specs=[
            # gamma: tiny scalar parameter, lives in SMEM, untiled.
            pl.BlockSpec(memory_space=pltpu.MemorySpace.SMEM),
            # token tile: (tm, C); last dim = full dim, no HBM padding needed.
            pl.BlockSpec((tm, C), lambda i: (i, 0)),
            # weight: full (C, C), same block every step (VMEM-resident).
            w_spec,
            # bias: full (1, C).
            b_spec,
        ],
        out_specs=pl.BlockSpec((tm, C), lambda i: (i, 0)),
        compiler_params=pltpu.CompilerParams(
            dimension_semantics=("parallel",),
            vmem_limit_bytes=vmem_limit_bytes),
    )


# Tri-state cache: None = unknown, True/False once the first call decides
# whether pipeline_mode=pl.Buffered(1) is supported by the running build.
_SINGLE_BUFFER_CONSTS = None


def residual_forward(x, w, b, gamma):
    """x: (..., C) activations.  w: (C, C), b: (C,), gamma: scalar / (1,)."""
    global _SINGLE_BUFFER_CONSTS

    orig_shape = x.shape
    C = int(orig_shape[-1])
    M = 1
    for d in orig_shape[:-1]:
        M *= int(d)
    dtype = x.dtype
    itemsize = int(np.dtype(dtype).itemsize)
    pack = max(_SUBLANE, 32 // itemsize)      # 8 f32 / 16 bf16 / 32 int8-fp8

    cap = _vmem_capacity_bytes()
    vmem_limit = int(cap * 3 // 4)            # ~96 MiB v5e/v6e, ~48 MiB v7x
    tm_max = 4096 if cap >= 100 * 1024 * 1024 else 2048
    budget = max(vmem_limit - 2 * 1024 * 1024, 4 * 1024 * 1024)

    # Pure layout plumbing -- no HBM padding, no extra slabs.
    x2d = x.reshape(M, C)
    w2d = w.astype(dtype)                     # bf16 I/O => bf16 weight traffic
    b2d = b.astype(dtype).reshape(1, C)
    gamma1 = jnp.asarray(gamma, dtype=jnp.float32).reshape(1)

    modes = ([True, False] if _SINGLE_BUFFER_CONSTS is None
             else [_SINGLE_BUFFER_CONSTS])
    last_err = None
    for single in modes:
        tm = _choose_tm(M, C, itemsize, budget, tm_max, pack,
                        w_buffers=1 if single else 2)
        try:
            call = _build_residual_call(M, C, dtype, tm, vmem_limit, single)
            out2d = call(gamma1, x2d, w2d, b2d)
        except Exception as e:   # e.g. pl.Buffered(1) unsupported -> fall back
            last_err = e
            continue
        _SINGLE_BUFFER_CONSTS = single
        return out2d.reshape(orig_shape)
    raise last_err


def residual_reference(x, w, b, gamma):
    shape = x.shape
    C = shape[-1]
    x2d = x.reshape(-1, C).astype(jnp.float32)
    h = x2d @ w.astype(jnp.float32) + b.astype(jnp.float32)
    out = x2d + jnp.asarray(gamma, jnp.float32).reshape(()) * h
    return out.reshape(shape)


if __name__ == "__main__":
    key = jax.random.PRNGKey(0)
    kx, kw, kb, kx2, kw2, kb2 = jax.random.split(key, 6)

    # --- Test 1: f32, small swin-like shape (C=32, not lane-aligned).
    B, H, W, C = 2, 8, 8, 32
    x = jax.random.normal(kx, (B, H, W, C), dtype=jnp.float32)
    w = jax.random.normal(kw, (C, C), dtype=jnp.float32) / jnp.sqrt(C)
    b = jax.random.normal(kb, (C,), dtype=jnp.float32) * 0.01

    # gamma initialized to zeros, exactly as nn.Parameter(torch.zeros(1)).
    gamma0 = jnp.zeros((1,), dtype=jnp.float32)
    out0 = jax.block_until_ready(residual_forward(x, w, b, gamma0))
    assert out0.shape == x.shape and out0.dtype == x.dtype
    assert jnp.allclose(out0, x, atol=1e-6)                      # pure skip path
    assert jnp.allclose(out0, residual_reference(x, w, b, gamma0),
                        atol=1e-4, rtol=1e-4)

    gamma1 = jnp.array([0.5], dtype=jnp.float32)
    out1 = jax.block_until_ready(residual_forward(x, w, b, gamma1))
    assert jnp.allclose(out1, residual_reference(x, w, b, gamma1),
                        atol=1e-4, rtol=1e-4)

    # --- Test 2: ragged token count (B*H*W=63, not a tile multiple), C=48.
    B2, H2, W2, C2 = 1, 7, 9, 48
    x2 = jax.random.normal(kx2, (B2, H2, W2, C2), dtype=jnp.float32)
    w2 = jax.random.normal(kw2, (C2, C2), dtype=jnp.float32) / jnp.sqrt(C2)
    b2 = jax.random.normal(kb2, (C2,), dtype=jnp.float32) * 0.01
    out2 = jax.block_until_ready(residual_forward(x2, w2, b2, gamma1))
    assert jnp.allclose(out2, residual_reference(x2, w2, b2, gamma1),
                        atol=1e-4, rtol=1e-4)

    # --- Test 3: bf16 I/O end-to-end (halves HBM traffic), f32 accumulate.
    xb = x.astype(jnp.bfloat16)
    outb = jax.block_until_ready(residual_forward(xb, w, b, gamma1))
    refb = residual_reference(
        xb.astype(jnp.float32),
        w.astype(jnp.bfloat16).astype(jnp.float32),
        b.astype(jnp.bfloat16).astype(jnp.float32),
        gamma1)
    assert outb.dtype == jnp.bfloat16
    assert jnp.allclose(outb.astype(jnp.float32), refb, atol=5e-2, rtol=5e-2)

    print("KERNEL_OK")
</pallas_src>

<mosaic_0001>
module attributes {stable_mosaic.version = 11 : i64} {
  func.func @_residual_kernel(%arg0: i32, %arg1: memref<1xf32, #tpu.memory_space<smem>>, %arg2: memref<64x32xf32, #tpu.memory_space<vmem>>, %arg3: memref<32x32xf32, #tpu.memory_space<vmem>>, %arg4: memref<1x32xf32, #tpu.memory_space<vmem>>, %arg5: memref<64x32xf32, #tpu.memory_space<vmem>>) attributes {dimension_semantics = [#tpu.dimension_semantics<parallel>], iteration_bounds = array<i64: 2>, scalar_prefetch = 0 : i64, scratch_operands = 0 : i64, tpu.core_type = #tpu.core_type<tc>, window_params = [{transform_indices = @transform_0, window_bounds = array<i64: 1>}, {transform_indices = @transform_1, window_bounds = array<i64: 64, 32>}, {pipeline_mode = #tpu.pipeline_mode<synchronous>, transform_indices = @transform_2, window_bounds = array<i64: 32, 32>}, {pipeline_mode = #tpu.pipeline_mode<synchronous>, transform_indices = @transform_3, window_bounds = array<i64: 1, 32>}, {transform_indices = @transform_4, window_bounds = array<i64: 64, 32>}]} {
    %c0 = arith.constant 0 : index
    %c0_0 = arith.constant 0 : index
    %0 = vector.load %arg2[%c0, %c0_0] : memref<64x32xf32, #tpu.memory_space<vmem>>, vector<64x32xf32>
    %c0_1 = arith.constant 0 : index
    %c0_2 = arith.constant 0 : index
    %1 = vector.load %arg3[%c0_1, %c0_2] : memref<32x32xf32, #tpu.memory_space<vmem>>, vector<32x32xf32>
    %cst = arith.constant dense<0.000000e+00> : vector<64x32xf32>
    %2 = tpu.matmul %0, %1, %cst {dimension_numbers = #tpu.dot_dimension_numbers<[1], [0], [0], [1], [0, 0, 1, 1], [], []>, precision = #tpu.contract_precision<fp32>} : vector<64x32xf32>, vector<32x32xf32>, vector<64x32xf32> -> vector<64x32xf32>
    %c0_3 = arith.constant 0 : index
    %c0_4 = arith.constant 0 : index
    %3 = vector.load %arg4[%c0_3, %c0_4] : memref<1x32xf32, #tpu.memory_space<vmem>>, vector<1x32xf32>
    %4 = vector.broadcast %3 : vector<1x32xf32> to vector<64x32xf32>
    %5 = arith.addf %2, %4 : vector<64x32xf32>
    %c0_5 = arith.constant 0 : index
    %6 = memref.load %arg1[%c0_5] : memref<1xf32, #tpu.memory_space<smem>>
    %7 = vector.broadcast %6 : f32 to vector<64x32xf32>
    %8 = arith.mulf %7, %5 : vector<64x32xf32>
    %9 = arith.addf %0, %8 : vector<64x32xf32>
    %c0_6 = arith.constant 0 : index
    %c0_7 = arith.constant 0 : index
    %10 = vector.load %arg5[%c0_6, %c0_7] : memref<64x32xf32, #tpu.memory_space<vmem>>, vector<64x32xf32>
    tpu.vector_store %arg5[%c0_6, %c0_7], %9 {strides = array<i32>} : memref<64x32xf32, #tpu.memory_space<vmem>>, vector<64x32xf32>,
    return
  }
  func.func @transform_0(%arg0: i32) -> i32 {
    %c0_i32 = arith.constant 0 : i32
    %c0_i32_0 = arith.constant 0 : i32
    return %c0_i32 : i32
  }
  func.func @transform_1(%arg0: i32) -> (i32, i32) {
    %c0_i32 = arith.constant 0 : i32
    %c0_i32_0 = arith.constant 0 : i32
    return %arg0, %c0_i32 : i32, i32
  }
  func.func @transform_2(%arg0: i32) -> (i32, i32) {
    %c0_i32 = arith.constant 0 : i32
    %c0_i32_0 = arith.constant 0 : i32
    %c0_i32_1 = arith.constant 0 : i32
    return %c0_i32, %c0_i32_0 : i32, i32
  }
  func.func @transform_3(%arg0: i32) -> (i32, i32) {
    %c0_i32 = arith.constant 0 : i32
    %c0_i32_0 = arith.constant 0 : i32
    %c0_i32_1 = arith.constant 0 : i32
    return %c0_i32, %c0_i32_0 : i32, i32
  }
  func.func @transform_4(%arg0: i32) -> (i32, i32) {
    %c0_i32 = arith.constant 0 : i32
    %c0_i32_0 = arith.constant 0 : i32
    return %arg0, %c0_i32 : i32, i32
  }
}

module attributes {stable_mosaic.version = 11 : i64} {
  func.func @_residual_kernel(%arg0: i32, %arg1: memref<1xf32, #tpu.memory_space<smem>>, %arg2: memref<64x32xf32, #tpu.memory_space<vmem>>, %arg3: memref<32x32xf32, #tpu.memory_space<vmem>>, %arg4: memref<1x32xf32, #tpu.memory_space<vmem>>, %arg5: memref<64x32xf32, #tpu.memory_space<vmem>>) attributes {dimension_semantics = [#tpu.dimension_semantics<parallel>], iteration_bounds = array<i64: 2>, scalar_prefetch = 0 : i64, scratch_operands = 0 : i64, tpu.core_type = #tpu.core_type<tc>, window_params = [{transform_indices = @transform_0, window_bounds = array<i64: 1>}, {transform_indices = @transform_1, window_bounds = array<i64: 64, 32>}, {pipeline_mode = #tpu.pipeline_mode<synchronous>, transform_indices = @transform_2, window_bounds = array<i64: 32, 32>}, {pipeline_mode = #tpu.pipeline_mode<synchronous>, transform_indices = @transform_3, window_bounds = array<i64: 1, 32>}, {transform_indices = @transform_4, window_bounds = array<i64: 64, 32>}]} {
    %c0 = arith.constant 0 : index
    %c0_0 = arith.constant 0 : index
    %0 = vector.load %arg2[%c0, %c0_0] : memref<64x32xf32, #tpu.memory_space<vmem>>, vector<64x32xf32>
    %c0_1 = arith.constant 0 : index
    %c0_2 = arith.constant 0 : index
    %1 = vector.load %arg3[%c0_1, %c0_2] : memref<32x32xf32, #tpu.memory_space<vmem>>, vector<32x32xf32>
    %cst = arith.constant dense<0.000000e+00> : vector<64x32xf32>
    %2 = tpu.matmul %0, %1, %cst {dimension_numbers = #tpu.dot_dimension_numbers<[1], [0], [0], [1], [0, 0, 1, 1], [], []>, precision = #tpu.contract_precision<fp32>} : vector<64x32xf32>, vector<32x32xf32>, vector<64x32xf32> -> vector<64x32xf32>
    %c0_3 = arith.constant 0 : index
    %c0_4 = arith.constant 0 : index
    %3 = vector.load %arg4[%c0_3, %c0_4] : memref<1x32xf32, #tpu.memory_space<vmem>>, vector<1x32xf32>
    %4 = vector.broadcast %3 : vector<1x32xf32> to vector<64x32xf32>
    %5 = arith.addf %2, %4 : vector<64x32xf32>
    %c0_5 = arith.constant 0 : index
    %6 = memref.load %arg1[%c0_5] : memref<1xf32, #tpu.memory_space<smem>>
    %7 = vector.broadcast %6 : f32 to vector<64x32xf32>
    %8 = arith.mulf %7, %5 : vector<64x32xf32>
    %9 = arith.addf %0, %8 : vector<64x32xf32>
    %c0_6 = arith.constant 0 : index
    %c0_7 = arith.constant 0 : index
    %10 = vector.load %arg5[%c0_6, %c0_7] : memref<64x32xf32, #tpu.memory_space<vmem>>, vector<64x32xf32>
    tpu.vector_store %arg5[%c0_6, %c0_7], %9 {strides = array<i32>} : memref<64x32xf32, #tpu.memory_space<vmem>>, vector<64x32xf32>,
    return
  }
  func.func @transform_0(%arg0: i32) -> i32 {
    %c0_i32 = arith.constant 0 : i32
    %c0_i32_0 = arith.constant 0 : i32
    return %c0_i32 : i32
  }
  func.func @transform_1(%arg0: i32) -> (i32, i32) {
    %c0_i32 = arith.constant 0 : i32
    %c0_i32_0 = arith.constant 0 : i32
    return %arg0, %c0_i32 : i32, i32
  }
  func.func @transform_2(%arg0: i32) -> (i32, i32) {
    %c0_i32 = arith.constant 0 : i32
    %c0_i32_0 = arith.constant 0 : i32
    %c0_i32_1 = arith.constant 0 : i32
    return %c0_i32, %c0_i32_0 : i32, i32
  }
  func.func @transform_3(%arg0: i32) -> (i32, i32) {
    %c0_i32 = arith.constant 0 : i32
    %c0_i32_0 = arith.constant 0 : i32
    %c0_i32_1 = arith.constant 0 : i32
    return %c0_i32, %c0_i32_0 : i32, i32
  }
  func.func @transform_4(%arg0: i32) -> (i32, i32) {
    %c0_i32 = arith.constant 0 : i32
    %c0_i32_0 = arith.constant 0 : i32
    return %arg0, %c0_i32 : i32, i32
  }
}

</mosaic_0001>

<llo_original>
// kernel: tpu_custom_call.1
$region0: #{tpu_custom_call.1}
  #allocation0 [shape = 'u32[]', space=smem, size = 0x4, offset = 0x4, fixed_abs, tag = 'smem constant byte address 0x4 - core index']
  #allocation1 [shape = 'u32[72,128]{1,0:T(1,128)}', space=vmem, size = 0x9000, scoped, tag = 'internal scratch']
  #allocation2 [shape = 'f32[1]{0:T(128)S(6)}', space=smem, size = 0x200, scoped, tag = 'scoped memory for tpu_custom_call.1']
  %s0 = inlined_call_operand.<no memory space> [shape: f32[1], index: 0, kind: input, shape index: {}]
  %s1 = inlined_call_operand.vmem [shape: f32[128,32], index: 1, kind: input, shape index: {}]
  %s2 = inlined_call_operand.vmem [shape: f32[32,32], index: 2, kind: input, shape index: {}]
  %s3 = inlined_call_operand.vmem [shape: f32[1,32], index: 3, kind: input, shape index: {}]
  %s4 = inlined_call_operand.vmem [shape: f32[128,32], index: 4, kind: output, shape index: {}]
  %s5 = sld [smem:[#allocation0]]
  $region49: #{tpu_custom_call.1} parent=0
    _
  %s7 = ssub.s32 1, %s5
  %s8 = scalar_select 0, %s7, %s5
  %9 = sst [smem:[#allocation2]] %s0
  loop: start=0, step=1, limit=4
  $region2: #{tpu_custom_call.1} parent=0 // loop_pre_header
    _
  $region3: #{tpu_custom_call.1} parent=0 // loop_header
    %s11 = sphi 0, %s15
    %p12 = scmp.ge.s32.totalorder %s11, 4
    %s19 = sphi 0, %s19
    %s21 = sphi 0, %s19
    %s22 = sphi 0, %s21
    %s36 = sphi 0, %s22
    %s42 = sphi 0, %s44
    %s45 = sphi 0, %s42
    %s46 = sphi 0, %s45
    %s62 = sphi 0, %s46
    %s66 = sphi 0, %s66
    %s68 = sphi 0, %s66
    %s69 = sphi 0, %s68
    %s83 = sphi 0, %s69
    %s87 = sphi 0, %s87
    %s89 = sphi 0, %s87
    %s90 = sphi 0, %s89
    %s104 = sphi 0, %s90
    %s110 = sphi 0, %s112
    %s113 = sphi 0, %s110
    %s114 = sphi 0, %s113
    %s130 = sphi 0, %s114
  $region4: #{tpu_custom_call.1} parent=0 // loop_header_branch
    %14 = sbr.rel (%p12) target = $region8
  $region5: #{tpu_custom_call.1} parent=0 // loop_body
    %s16 = ssub.s32 %s11, 1
    %s17 = ssub.s32 %s11, 2
    %s18 = sadd.s32 %s11, 1
    %s20 = sadd.s32 %s19, 1
    %p23 = scmp.eq.s32.totalorder %s11, 1
    %p24 = scmp.ne.s32.totalorder %s19, %s21
    %p25 = scmp.eq.s32.totalorder %s11, 0
    %p26 = por %p24, %p25
    %p27 = scmp.ne.s32.totalorder %s19, %s21
    %p28 = scmp.eq.s32.totalorder %s16, 1
    %p29 = por %p27, %p28
    %p30 = scmp.ne.s32.totalorder %s21, %s22
    %p31 = scmp.eq.s32.totalorder %s16, 0
    %p32 = por %p30, %p31
    %p33 = scmp.ne.s32.totalorder %s21, %s22
    %p34 = scmp.eq.s32.totalorder %s17, 1
    %p35 = por %p33, %p34
    %p37 = scmp.ne.s32.totalorder %s22, %s36
    %p38 = scmp.eq.s32.totalorder %s17, 0
    %p39 = por %p37, %p38
    %s40 = ssub.s32 %s11, %s18
    %p41 = scmp.eq.s32.totalorder %s40, 0
    %s43 = sadd.s32 %s42, 1
    %s44 = scalar_select %p41, %s42, %s43
    %p47 = pneg %p41
    %p48 = scmp.eq.s32.totalorder %s11, 1
    %p49 = por %p47, %p48
    %p50 = scmp.ne.s32.totalorder %s42, %s45
    %p51 = scmp.eq.s32.totalorder %s11, 0
    %p52 = por %p50, %p51
    %p53 = scmp.ne.s32.totalorder %s42, %s45
    %p54 = scmp.eq.s32.totalorder %s16, 1
    %p55 = por %p53, %p54
    %p56 = scmp.ne.s32.totalorder %s45, %s46
    %p57 = scmp.eq.s32.totalorder %s16, 0
    %p58 = por %p56, %p57
    %p59 = scmp.ne.s32.totalorder %s45, %s46
    %p60 = scmp.eq.s32.totalorder %s17, 1
    %p61 = por %p59, %p60
    %p63 = scmp.ne.s32.totalorder %s46, %s62
    %p64 = scmp.eq.s32.totalorder %s17, 0
    %p65 = por %p63, %p64
    %s67 = sadd.s32 %s66, 1
    %p70 = scmp.eq.s32.totalorder %s11, 1
    %p71 = scmp.ne.s32.totalorder %s66, %s68
    %p72 = scmp.eq.s32.totalorder %s11, 0
    %p73 = por %p71, %p72
    %p74 = scmp.ne.s32.totalorder %s66, %s68
    %p75 = scmp.eq.s32.totalorder %s16, 1
    %p76 = por %p74, %p75
    %p77 = scmp.ne.s32.totalorder %s68, %s69
    %p78 = scmp.eq.s32.totalorder %s16, 0
    %p79 = por %p77, %p78
    %p80 = scmp.ne.s32.totalorder %s68, %s69
    %p81 = scmp.eq.s32.totalorder %s17, 1
    %p82 = por %p80, %p81
    %p84 = scmp.ne.s32.totalorder %s69, %s83
    %p85 = scmp.eq.s32.totalorder %s17, 0
    %p86 = por %p84, %p85
    %s88 = sadd.s32 %s87, 1
    %p91 = scmp.eq.s32.totalorder %s11, 1
    %p92 = scmp.ne.s32.totalorder %s87, %s89
    %p93 = scmp.eq.s32.totalorder %s11, 0
    %p94 = por %p92, %p93
    %p95 = scmp.ne.s32.totalorder %s87, %s89
    %p96 = scmp.eq.s32.totalorder %s16, 1
    %p97 = por %p95, %p96
    %p98 = scmp.ne.s32.totalorder %s89, %s90
    %p99 = scmp.eq.s32.totalorder %s16, 0
    %p100 = por %p98, %p99
    %p101 = scmp.ne.s32.totalorder %s89, %s90
    %p102 = scmp.eq.s32.totalorder %s17, 1
    %p103 = por %p101, %p102
    %p105 = scmp.ne.s32.totalorder %s90, %s104
    %p106 = scmp.eq.s32.totalorder %s17, 0
    %p107 = por %p105, %p106
    %s108 = ssub.s32 %s11, %s18
    %p109 = scmp.eq.s32.totalorder %s108, 0
    %s111 = sadd.s32 %s110, 1
    %s112 = scalar_select %p109, %s110, %s111
    %p115 = pneg %p109
    %p116 = scmp.eq.s32.totalorder %s11, 1
    %p117 = por %p115, %p116
    %p118 = scmp.ne.s32.totalorder %s110, %s113
    %p119 = scmp.eq.s32.totalorder %s11, 0
    %p120 = por %p118, %p119
    %p121 = scmp.ne.s32.totalorder %s110, %s113
    %p122 = scmp.eq.s32.totalorder %s16, 1
    %p123 = por %p121, %p122
    %p124 = scmp.ne.s32.totalorder %s113, %s114
    %p125 = scmp.eq.s32.totalorder %s16, 0
    %p126 = por %p124, %p125
    %p127 = scmp.ne.s32.totalorder %s113, %s114
    %p128 = scmp.eq.s32.totalorder %s17, 1
    %p129 = por %p127, %p128
    %p131 = scmp.ne.s32.totalorder %s114, %s130
    %p132 = scmp.eq.s32.totalorder %s17, 0
    %p133 = por %p131, %p132
    %p134 = scmp.le.s32.totalorder 1, %s11
    %p135 = scmp.lt.s32.totalorder %s11, 3
    %p136 = pnand %p134, %p135
    %p137 = pneg %p136
    // Predicated region
    $region9: #{tpu_custom_call.1} parent=5 // pred_check
      _
    $region10: #{tpu_custom_call.1} parent=5 // pred_check_branch
      %139 = sbr.rel (%p136) target = $region12
    $region11: #{tpu_custom_call.1} parent=5 // pred_region
      %s140 = ssub.s32 %s11, 1
      // Predicated region
      $region13: #{tpu_custom_call.1} parent=11 // pred_check
        %p141 = pneg %p32
      $region14: #{tpu_custom_call.1} parent=11 // pred_check_branch
        %143 = sbr.rel (%p141) target = $region16
      $region15: #{tpu_custom_call.1} parent=11 // pred_region
        _
      $region16: #{tpu_custom_call.1} parent=11 // pred_fallthru
        _
      // Predicated region
      $region17: #{tpu_custom_call.1} parent=11 // pred_check
        %p144 = pneg %p79
      $region18: #{tpu_custom_call.1} parent=11 // pred_check_branch
        %146 = sbr.rel (%p144) target = $region20
      $region19: #{tpu_custom_call.1} parent=11 // pred_region
        _
      $region20: #{tpu_custom_call.1} parent=11 // pred_fallthru
        _
      // Predicated region
      $region21: #{tpu_custom_call.1} parent=11 // pred_check
        %p147 = pneg %p100
      $region22: #{tpu_custom_call.1} parent=11 // pred_check_branch
        %149 = sbr.rel (%p147) target = $region24
      $region23: #{tpu_custom_call.1} parent=11 // pred_region
        _
      $region24: #{tpu_custom_call.1} parent=11 // pred_fallthru
        _
    $region12: #{tpu_custom_call.1} parent=5 // pred_fallthru
      _
    %p150 = scmp.lt.s32.totalorder %s11, 2
    // Predicated region
    $region25: #{tpu_custom_call.1} parent=5 // pred_check
      %p151 = pneg %p150
    $region26: #{tpu_custom_call.1} parent=5 // pred_check_branch
      %153 = sbr.rel (%p151) target = $region28
    $region27: #{tpu_custom_call.1} parent=5 // pred_region
      // Predicated region
      $region29: #{tpu_custom_call.1} parent=27 // pred_check
        %p154 = pneg %p52
      $region30: #{tpu_custom_call.1} parent=27 // pred_check_branch
        %156 = sbr.rel (%p154) target = $region32
      $region31: #{tpu_custom_call.1} parent=27 // pred_region
        %s157 = smul.u32 8, %s11
        %p158 = scmp.lt.s32.totalorder %s157, 15
        %s159 = scalar_select %p158, %s157, 15
        %s160 = smul.addr %s159, 8
        %s161 = scalar_lea.vmem %s1, %s160
        %s162 = smul.u32 8, %s11
      $region32: #{tpu_custom_call.1} parent=27 // pred_fallthru
        _
    $region28: #{tpu_custom_call.1} parent=5 // pred_fallthru
      _
    %p163 = scmp.le.s32.totalorder 1, %s11
    %p164 = scmp.lt.s32.totalorder %s11, 3
    %p165 = pnand %p163, %p164
    %p166 = pneg %p165
    // Predicated region
    $region33: #{tpu_custom_call.1} parent=5 // pred_check
      _
    $region34: #{tpu_custom_call.1} parent=5 // pred_check_branch
      %168 = sbr.rel (%p165) target = $region36
    $region35: #{tpu_custom_call.1} parent=5 // pred_region
      %s169 = ssub.s32 %s11, 1
      %p170 = pneg %p32
      %p171 = pneg %p29
      %s172 = smul.u32 8, %s16
      %p173 = scmp.lt.s32.totalorder %s172, 15
      %s174 = scalar_select %p173, %s172, 15
      %s175 = smul.addr %s174, 8
      %s176 = scalar_lea.vmem %s1, %s175
      %p177 = pneg %p58
      %p178 = pneg %p55
      %p179 = pneg %p79
      %p180 = pneg %p76
      %p181 = pneg %p100
      %p182 = pneg %p97
      %p183 = pneg %p126
      %p184 = pneg %p123
      %s185 = smul.u32 8, %s16
      %p186 = scmp.lt.s32.totalorder %s185, 15
      %s187 = scalar_select %p186, %s185, 15
      %s188 = smul.addr %s187, 8
      %s189 = scalar_lea.vmem %s4, %s188
      %s190 = smul.u32 8, %s16
      %p191 = scmp.lt.s32.totalorder %s190, 15
      %s192 = scalar_select %p191, %s190, 15
      %s193 = smul.addr %s192, 8
      %s194 = scalar_lea.vmem %s1, %s193
      %s195 = smul.u32 8, %s16
      %s196 = smul.u32 8, %s16
      %p197 = scmp.lt.s32.totalorder %s196, 15
      %s198 = scalar_select %p197, %s196, 15
      %s199 = smul.addr %s198, 8
      %s200 = scalar_lea.vmem %s4, %s199
      %s201 = smul.u32 8, %s16
      %v202 = vld [vmem:[%s194] sm:$0xff]
      %v203 = vld [vmem:[%s194 + $0x8] sm:$0xff]
      %v204 = vld [vmem:[%s194 + $0x10] sm:$0xff]
      %v205 = vld [vmem:[%s194 + $0x18] sm:$0xff]
      %v206 = vld [vmem:[%s194 + $0x20] sm:$0xff]
      %v207 = vld [vmem:[%s194 + $0x28] sm:$0xff]
      %v208 = vld [vmem:[%s194 + $0x30] sm:$0xff]
      %v209 = vld [vmem:[%s194 + $0x38] sm:$0xff]
      %v210 = vld [vmem:[%s2] sm:$0xff]
      %v211 = vld [vmem:[%s2 + $0x8] sm:$0xff]
      %v212 = vld [vmem:[%s2 + $0x10] sm:$0xff]
      %v213 = vld [vmem:[%s2 + $0x18] sm:$0xff]
      %v214 = vld [vmem:[%s3] sm:$0x1]
      %v216 = vperm.slane %v214, 0
      %vm218 = vcmask 261120
      %v220 = vsel %vm218, %v202, 0
      %v223 = vsel %vm218, %v203, 0
      %v226 = vsel %vm218, %v204, 0
      %v229 = vsel %vm218, %v205, 0
      %v232 = vsel %vm218, %v206, 0
      %v235 = vsel %vm218, %v207, 0
      %v238 = vsel %vm218, %v208, 0
      %v241 = vsel %vm218, %v209, 0
      %243 = vmatpush.msra.mxu0 0.0
      %244 = vmatpush.msra.mxu0 0.0
      %245 = vmatpush.msra.mxu0 0.0
      %246 = vmatpush.msra.mxu0 0.0
      %247 = vmatpush.msra.mxu0 0.0
      %248 = vmatpush.msra.mxu0 0.0
      %249 = vmatpush.msra.mxu0 0.0
      %250 = vmatpush.msra.mxu0 0.0
      %251 = vmatpush.msra.mxu0 0.0
      %252 = vmatpush.msra.mxu0 0.0
      %253 = vmatpush.msra.mxu0 0.0
      %254 = vmatpush.msra.mxu0 0.0
      %v255 = vand.u32 %v213, 4294901760
      %256 = vmatpush.msra.mxu0 %v255
      %v257 = vand.u32 %v212, 4294901760
      %258 = vmatpush.msra.mxu0 %v257
      %v259 = vand.u32 %v211, 4294901760
      %260 = vmatpush.msra.mxu0 %v259
      %v261 = vand.u32 %v210, 4294901760
      %262 = vmatpush.msra.mxu0 %v261
      %v263 = vand.u32 %v220, 4294901760
      %v264 = vsub.f32 %v220, %v263
      %v265 = vand.u32 %v264, 4294901760
      %v266 = vsub.f32 %v264, %v265
      %v267 = vand.u32 %v266, 4294901760
      %268 = vmatmul.f32.gmra.mxu0 %v267
      %v269 = vpop.f32.mrf.mxu0
      %v270 = vadd.f32 %v216, %v269
      %v271 = vand.u32 %v223, 4294901760
      %v272 = vsub.f32 %v223, %v271
      %v273 = vand.u32 %v272, 4294901760
      %v274 = vsub.f32 %v272, %v273
      %v275 = vand.u32 %v274, 4294901760
      %276 = vmatmul.f32.gmra.mxu0 %v275
      %v277 = vpop.f32.mrf.mxu0
      %v278 = vadd.f32 %v216, %v277
      %v279 = vand.u32 %v226, 4294901760
      %v280 = vsub.f32 %v226, %v279
      %v281 = vand.u32 %v280, 4294901760
      %v282 = vsub.f32 %v280, %v281
      %v283 = vand.u32 %v282, 4294901760
      %284 = vmatmul.f32.gmra.mxu0 %v283
      %v285 = vpop.f32.mrf.mxu0
      %v286 = vadd.f32 %v216, %v285
      %v287 = vand.u32 %v229, 4294901760
      %v288 = vsub.f32 %v229, %v287
      %v289 = vand.u32 %v288, 4294901760
      %v290 = vsub.f32 %v288, %v289
      %v291 = vand.u32 %v290, 4294901760
      %292 = vmatmul.f32.gmra.mxu0 %v291
      %v293 = vpop.f32.mrf.mxu0
      %v294 = vadd.f32 %v216, %v293
      %v295 = vand.u32 %v232, 4294901760
      %v296 = vsub.f32 %v232, %v295
      %v297 = vand.u32 %v296, 4294901760
      %v298 = vsub.f32 %v296, %v297
      %v299 = vand.u32 %v298, 4294901760
      %300 = vmatmul.f32.gmra.mxu0 %v299
      %v301 = vpop.f32.mrf.mxu0
      %v302 = vadd.f32 %v216, %v301
      %v303 = vand.u32 %v235, 4294901760
      %v304 = vsub.f32 %v235, %v303
      %v305 = vand.u32 %v304, 4294901760
      %v306 = vsub.f32 %v304, %v305
      %v307 = vand.u32 %v306, 4294901760
      %308 = vmatmul.f32.gmra.mxu0 %v307
      %v309 = vpop.f32.mrf.mxu0
      %v310 = vadd.f32 %v216, %v309
      %v311 = vand.u32 %v238, 4294901760
      %v312 = vsub.f32 %v238, %v311
      %v313 = vand.u32 %v312, 4294901760
      %v314 = vsub.f32 %v312, %v313
      %v315 = vand.u32 %v314, 4294901760
      %316 = vmatmul.f32.gmra.mxu0 %v315
      %v317 = vpop.f32.mrf.mxu0
      %v318 = vadd.f32 %v216, %v317
      %v319 = vand.u32 %v241, 4294901760
      %v320 = vsub.f32 %v241, %v319
      %v321 = vand.u32 %v320, 4294901760
      %v322 = vsub.f32 %v320, %v321
      %v323 = vand.u32 %v322, 4294901760
      %324 = vmatmul.f32.gmra.mxu0 %v323
      %v325 = vpop.f32.mrf.mxu0
      %v326 = vadd.f32 %v216, %v325
      %327 = vdwg.mxu0
      %328 = vmatpush.msra.mxu0 0.0
      %329 = vmatpush.msra.mxu0 0.0
      %330 = vmatpush.msra.mxu0 0.0
      %331 = vmatpush.msra.mxu0 0.0
      %332 = vmatpush.msra.mxu0 0.0
      %333 = vmatpush.msra.mxu0 0.0
      %334 = vmatpush.msra.mxu0 0.0
      %335 = vmatpush.msra.mxu0 0.0
      %336 = vmatpush.msra.mxu0 0.0
      %337 = vmatpush.msra.mxu0 0.0
      %338 = vmatpush.msra.mxu0 0.0
      %339 = vmatpush.msra.mxu0 0.0
      %v340 = vand.u32 %v213, 4294901760
      %v341 = vsub.f32 %v213, %v340
      %v342 = vand.u32 %v341, 4294901760
      %v343 = vsub.f32 %v341, %v342
      %v344 = vand.u32 %v343, 4294901760
      %345 = vmatpush.msra.mxu0 %v344
      %v346 = vand.u32 %v212, 4294901760
      %v347 = vsub.f32 %v212, %v346
      %v348 = vand.u32 %v347, 4294901760
      %v349 = vsub.f32 %v347, %v348
      %v350 = vand.u32 %v349, 4294901760
      %351 = vmatpush.msra.mxu0 %v350
      %v352 = vand.u32 %v211, 4294901760
      %v353 = vsub.f32 %v211, %v352
      %v354 = vand.u32 %v353, 4294901760
      %v355 = vsub.f32 %v353, %v354
      %v356 = vand.u32 %v355, 4294901760
      %357 = vmatpush.msra.mxu0 %v356
      %v358 = vand.u32 %v210, 4294901760
      %v359 = vsub.f32 %v210, %v358
      %v360 = vand.u32 %v359, 4294901760
      %v361 = vsub.f32 %v359, %v360
      %v362 = vand.u32 %v361, 4294901760
      %363 = vmatpush.msra.mxu0 %v362
      %v364 = vand.u32 %v220, 4294901760
      %365 = vmatmul.f32.gmra.mxu0 %v364
      %v366 = vpop.f32.mrf.mxu0
      %v367 = vadd.f32 %v270, %v366
      %v368 = vand.u32 %v223, 4294901760
      %369 = vmatmul.f32.gmra.mxu0 %v368
      %v370 = vpop.f32.mrf.mxu0
      %v371 = vadd.f32 %v278, %v370
      %v372 = vand.u32 %v226, 4294901760
      %373 = vmatmul.f32.gmra.mxu0 %v372
      %v374 = vpop.f32.mrf.mxu0
      %v375 = vadd.f32 %v286, %v374
      %v376 = vand.u32 %v229, 4294901760
      %377 = vmatmul.f32.gmra.mxu0 %v376
      %v378 = vpop.f32.mrf.mxu0
      %v379 = vadd.f32 %v294, %v378
      %v380 = vand.u32 %v232, 4294901760
      %381 = vmatmul.f32.gmra.mxu0 %v380
      %v382 = vpop.f32.mrf.mxu0
      %v383 = vadd.f32 %v302, %v382
      %v384 = vand.u32 %v235, 4294901760
      %385 = vmatmul.f32.gmra.mxu0 %v384
      %v386 = vpop.f32.mrf.mxu0
      %v387 = vadd.f32 %v310, %v386
      %v388 = vand.u32 %v238, 4294901760
      %389 = vmatmul.f32.gmra.mxu0 %v388
      %v390 = vpop.f32.mrf.mxu0
      %v391 = vadd.f32 %v318, %v390
      %v392 = vand.u32 %v241, 4294901760
      %393 = vmatmul.f32.gmra.mxu0 %v392
      %v394 = vpop.f32.mrf.mxu0
      %v395 = vadd.f32 %v326, %v394
      %396 = vdwg.mxu0
      %397 = vmatpush.msra.mxu0 0.0
      %398 = vmatpush.msra.mxu0 0.0
      %399 = vmatpush.msra.mxu0 0.0
      %400 = vmatpush.msra.mxu0 0.0
      %401 = vmatpush.msra.mxu0 0.0
      %402 = vmatpush.msra.mxu0 0.0
      %403 = vmatpush.msra.mxu0 0.0
      %404 = vmatpush.msra.mxu0 0.0
      %405 = vmatpush.msra.mxu0 0.0
      %406 = vmatpush.msra.mxu0 0.0
      %407 = vmatpush.msra.mxu0 0.0
      %408 = vmatpush.msra.mxu0 0.0
      %v409 = vand.u32 %v213, 4294901760
      %v410 = vsub.f32 %v213, %v409
      %411 = vmatpush.msra.mxu0 %v410
      %v412 = vand.u32 %v212, 4294901760
      %v413 = vsub.f32 %v212, %v412
      %414 = vmatpush.msra.mxu0 %v413
      %v415 = vand.u32 %v211, 4294901760
      %v416 = vsub.f32 %v211, %v415
      %417 = vmatpush.msra.mxu0 %v416
      %v418 = vand.u32 %v210, 4294901760
      %v419 = vsub.f32 %v210, %v418
      %420 = vmatpush.msra.mxu0 %v419
      %v421 = vand.u32 %v220, 4294901760
      %v422 = vsub.f32 %v220, %v421
      %423 = vmatmul.f32.gmra.mxu0 %v422
      %v424 = vpop.f32.mrf.mxu0
      %v425 = vadd.f32 %v367, %v424
      %v426 = vand.u32 %v223, 4294901760
      %v427 = vsub.f32 %v223, %v426
      %428 = vmatmul.f32.gmra.mxu0 %v427
      %v429 = vpop.f32.mrf.mxu0
      %v430 = vadd.f32 %v371, %v429
      %v431 = vand.u32 %v226, 4294901760
      %v432 = vsub.f32 %v226, %v431
      %433 = vmatmul.f32.gmra.mxu0 %v432
      %v434 = vpop.f32.mrf.mxu0
      %v435 = vadd.f32 %v375, %v434
      %v436 = vand.u32 %v229, 4294901760
      %v437 = vsub.f32 %v229, %v436
      %438 = vmatmul.f32.gmra.mxu0 %v437
      %v439 = vpop.f32.mrf.mxu0
      %v440 = vadd.f32 %v379, %v439
      %v441 = vand.u32 %v232, 4294901760
      %v442 = vsub.f32 %v232, %v441
      %443 = vmatmul.f32.gmra.mxu0 %v442
      %v444 = vpop.f32.mrf.mxu0
      %v445 = vadd.f32 %v383, %v444
      %v446 = vand.u32 %v235, 4294901760
      %v447 = vsub.f32 %v235, %v446
      %448 = vmatmul.f32.gmra.mxu0 %v447
      %v449 = vpop.f32.mrf.mxu0
      %v450 = vadd.f32 %v387, %v449
      %v451 = vand.u32 %v238, 4294901760
      %v452 = vsub.f32 %v238, %v451
      %453 = vmatmul.f32.gmra.mxu0 %v452
      %v454 = vpop.f32.mrf.mxu0
      %v455 = vadd.f32 %v391, %v454
      %v456 = vand.u32 %v241, 4294901760
      %v457 = vsub.f32 %v241, %v456
      %458 = vmatmul.f32.gmra.mxu0 %v457
      %v459 = vpop.f32.mrf.mxu0
      %v460 = vadd.f32 %v395, %v459
      %461 = vdwg.mxu0
      %462 = vmatpush.msra.mxu0 0.0
      %463 = vmatpush.msra.mxu0 0.0
      %464 = vmatpush.msra.mxu0 0.0
      %465 = vmatpush.msra.mxu0 0.0
      %466 = vmatpush.msra.mxu0 0.0
      %467 = vmatpush.msra.mxu0 0.0
      %468 = vmatpush.msra.mxu0 0.0
      %469 = vmatpush.msra.mxu0 0.0
      %470 = vmatpush.msra.mxu0 0.0
      %471 = vmatpush.msra.mxu0 0.0
      %472 = vmatpush.msra.mxu0 0.0
      %473 = vmatpush.msra.mxu0 0.0
      %v474 = vand.u32 %v213, 4294901760
      %475 = vmatpush.msra.mxu0 %v474
      %v476 = vand.u32 %v212, 4294901760
      %477 = vmatpush.msra.mxu0 %v476
      %v478 = vand.u32 %v211, 4294901760
      %479 = vmatpush.msra.mxu0 %v478
      %v480 = vand.u32 %v210, 4294901760
      %481 = vmatpush.msra.mxu0 %v480
      %v482 = vand.u32 %v220, 4294901760
      %v483 = vsub.f32 %v220, %v482
      %v484 = vand.u32 %v483, 4294901760
      %485 = vmatmul.f32.gmra.mxu0 %v484
      %v486 = vpop.f32.mrf.mxu0
      %v487 = vadd.f32 %v425, %v486
      %v488 = vand.u32 %v223, 4294901760
      %v489 = vsub.f32 %v223, %v488
      %v490 = vand.u32 %v489, 4294901760
      %491 = vmatmul.f32.gmra.mxu0 %v490
      %v492 = vpop.f32.mrf.mxu0
      %v493 = vadd.f32 %v430, %v492
      %v494 = vand.u32 %v226, 4294901760
      %v495 = vsub.f32 %v226, %v494
      %v496 = vand.u32 %v495, 4294901760
      %497 = vmatmul.f32.gmra.mxu0 %v496
      %v498 = vpop.f32.mrf.mxu0
      %v499 = vadd.f32 %v435, %v498
      %v500 = vand.u32 %v229, 4294901760
      %v501 = vsub.f32 %v229, %v500
      %v502 = vand.u32 %v501, 4294901760
      %503 = vmatmul.f32.gmra.mxu0 %v502
      %v504 = vpop.f32.mrf.mxu0
      %v505 = vadd.f32 %v440, %v504
      %v506 = vand.u32 %v232, 4294901760
      %v507 = vsub.f32 %v232, %v506
      %v508 = vand.u32 %v507, 4294901760
      %509 = vmatmul.f32.gmra.mxu0 %v508
      %v510 = vpop.f32.mrf.mxu0
      %v511 = vadd.f32 %v445, %v510
      %v512 = vand.u32 %v235, 4294901760
      %v513 = vsub.f32 %v235, %v512
      %v514 = vand.u32 %v513, 4294901760
      %515 = vmatmul.f32.gmra.mxu0 %v514
      %v516 = vpop.f32.mrf.mxu0
      %v517 = vadd.f32 %v450, %v516
      %v518 = vand.u32 %v238, 4294901760
      %v519 = vsub.f32 %v238, %v518
      %v520 = vand.u32 %v519, 4294901760
      %521 = vmatmul.f32.gmra.mxu0 %v520
      %v522 = vpop.f32.mrf.mxu0
      %v523 = vadd.f32 %v455, %v522
      %v524 = vand.u32 %v241, 4294901760
      %v525 = vsub.f32 %v241, %v524
      %v526 = vand.u32 %v525, 4294901760
      %527 = vmatmul.f32.gmra.mxu0 %v526
      %v528 = vpop.f32.mrf.mxu0
      %v529 = vadd.f32 %v460, %v528
      %530 = vdwg.mxu0
      %531 = vmatpush.msra.mxu0 0.0
      %532 = vmatpush.msra.mxu0 0.0
      %533 = vmatpush.msra.mxu0 0.0
      %534 = vmatpush.msra.mxu0 0.0
      %535 = vmatpush.msra.mxu0 0.0
      %536 = vmatpush.msra.mxu0 0.0
      %537 = vmatpush.msra.mxu0 0.0
      %538 = vmatpush.msra.mxu0 0.0
      %539 = vmatpush.msra.mxu0 0.0
      %540 = vmatpush.msra.mxu0 0.0
      %541 = vmatpush.msra.mxu0 0.0
      %542 = vmatpush.msra.mxu0 0.0
      %v543 = vand.u32 %v213, 4294901760
      %v544 = vsub.f32 %v213, %v543
      %v545 = vand.u32 %v544, 4294901760
      %546 = vmatpush.msra.mxu0 %v545
      %v547 = vand.u32 %v212, 4294901760
      %v548 = vsub.f32 %v212, %v547
      %v549 = vand.u32 %v548, 4294901760
      %550 = vmatpush.msra.mxu0 %v549
      %v551 = vand.u32 %v211, 4294901760
      %v552 = vsub.f32 %v211, %v551
      %v553 = vand.u32 %v552, 4294901760
      %554 = vmatpush.msra.mxu0 %v553
      %v555 = vand.u32 %v210, 4294901760
      %v556 = vsub.f32 %v210, %v555
      %v557 = vand.u32 %v556, 4294901760
      %558 = vmatpush.msra.mxu0 %v557
      %v559 = vand.u32 %v220, 4294901760
      %560 = vmatmul.f32.gmra.mxu0 %v559
      %v561 = vpop.f32.mrf.mxu0
      %v562 = vadd.f32 %v487, %v561
      %v563 = vand.u32 %v223, 4294901760
      %564 = vmatmul.f32.gmra.mxu0 %v563
      %v565 = vpop.f32.mrf.mxu0
      %v566 = vadd.f32 %v493, %v565
      %v567 = vand.u32 %v226, 4294901760
      %568 = vmatmul.f32.gmra.mxu0 %v567
      %v569 = vpop.f32.mrf.mxu0
      %v570 = vadd.f32 %v499, %v569
      %v571 = vand.u32 %v229, 4294901760
      %572 = vmatmul.f32.gmra.mxu0 %v571
      %v573 = vpop.f32.mrf.mxu0
      %v574 = vadd.f32 %v505, %v573
      %v575 = vand.u32 %v232, 4294901760
      %576 = vmatmul.f32.gmra.mxu0 %v575
      %v577 = vpop.f32.mrf.mxu0
      %v578 = vadd.f32 %v511, %v577
      %v579 = vand.u32 %v235, 4294901760
      %580 = vmatmul.f32.gmra.mxu0 %v579
      %v581 = vpop.f32.mrf.mxu0
      %v582 = vadd.f32 %v517, %v581
      %v583 = vand.u32 %v238, 4294901760
      %584 = vmatmul.f32.gmra.mxu0 %v583
      %v585 = vpop.f32.mrf.mxu0
      %v586 = vadd.f32 %v523, %v585
      %v587 = vand.u32 %v241, 4294901760
      %588 = vmatmul.f32.gmra.mxu0 %v587
      %v589 = vpop.f32.mrf.mxu0
      %v590 = vadd.f32 %v529, %v589
      %591 = vdwg.mxu0
      %592 = vmatpush.msra.mxu0 0.0
      %593 = vmatpush.msra.mxu0 0.0
      %594 = vmatpush.msra.mxu0 0.0
      %595 = vmatpush.msra.mxu0 0.0
      %596 = vmatpush.msra.mxu0 0.0
      %597 = vmatpush.msra.mxu0 0.0
      %598 = vmatpush.msra.mxu0 0.0
      %599 = vmatpush.msra.mxu0 0.0
      %600 = vmatpush.msra.mxu0 0.0
      %601 = vmatpush.msra.mxu0 0.0
      %602 = vmatpush.msra.mxu0 0.0
      %603 = vmatpush.msra.mxu0 0.0
      %v604 = vand.u32 %v213, 4294901760
      %605 = vmatpush.msra.mxu0 %v604
      %v606 = vand.u32 %v212, 4294901760
      %607 = vmatpush.msra.mxu0 %v606
      %v608 = vand.u32 %v211, 4294901760
      %609 = vmatpush.msra.mxu0 %v608
      %v610 = vand.u32 %v210, 4294901760
      %611 = vmatpush.msra.mxu0 %v610
      %v612 = vand.u32 %v220, 4294901760
      %613 = vmatmul.f32.gmra.mxu0 %v612
      %v614 = vpop.f32.mrf.mxu0
      %v615 = vadd.f32 %v562, %v614
      %v616 = vand.u32 %v223, 4294901760
      %617 = vmatmul.f32.gmra.mxu0 %v616
      %v618 = vpop.f32.mrf.mxu0
      %v619 = vadd.f32 %v566, %v618
      %v620 = vand.u32 %v226, 4294901760
      %621 = vmatmul.f32.gmra.mxu0 %v620
      %v622 = vpop.f32.mrf.mxu0
      %v623 = vadd.f32 %v570, %v622
      %v624 = vand.u32 %v229, 4294901760
      %625 = vmatmul.f32.gmra.mxu0 %v624
      %v626 = vpop.f32.mrf.mxu0
      %v627 = vadd.f32 %v574, %v626
      %v628 = vand.u32 %v232, 4294901760
      %629 = vmatmul.f32.gmra.mxu0 %v628
      %v630 = vpop.f32.mrf.mxu0
      %v631 = vadd.f32 %v578, %v630
      %v632 = vand.u32 %v235, 4294901760
      %633 = vmatmul.f32.gmra.mxu0 %v632
      %v634 = vpop.f32.mrf.mxu0
      %v635 = vadd.f32 %v582, %v634
      %v636 = vand.u32 %v238, 4294901760
      %637 = vmatmul.f32.gmra.mxu0 %v636
      %v638 = vpop.f32.mrf.mxu0
      %v639 = vadd.f32 %v586, %v638
      %v640 = vand.u32 %v241, 4294901760
      %641 = vmatmul.f32.gmra.mxu0 %v640
      %v642 = vpop.f32.mrf.mxu0
      %v643 = vadd.f32 %v590, %v642
      %644 = vdwg.mxu0
      %s645 = sld [smem:[#allocation2]]
      %v646 = vstv %s645
      %v647 = vmul.f32 %v646, %v615
      %v648 = vmul.f32 %v646, %v619
      %v649 = vmul.f32 %v646, %v623
      %v650 = vmul.f32 %v646, %v627
      %v651 = vmul.f32 %v646, %v631
      %v652 = vmul.f32 %v646, %v635
      %v653 = vmul.f32 %v646, %v639
      %v654 = vmul.f32 %v646, %v643
      %v655 = vadd.f32 %v202, %v647
      %v656 = vadd.f32 %v203, %v648
      %v657 = vadd.f32 %v204, %v649
      %v658 = vadd.f32 %v205, %v650
      %v659 = vadd.f32 %v206, %v651
      %v660 = vadd.f32 %v207, %v652
      %v661 = vadd.f32 %v208, %v653
      %v662 = vadd.f32 %v209, %v654
      %663 = vst.msk [vmem:[%s200] sm:$0xff] %vm218, %v655
      %664 = vst.msk [vmem:[%s200 + $0x8] sm:$0xff] %vm218, %v656
      %665 = vst.msk [vmem:[%s200 + $0x10] sm:$0xff] %vm218, %v657
      %666 = vst.msk [vmem:[%s200 + $0x18] sm:$0xff] %vm218, %v658
      %667 = vst.msk [vmem:[%s200 + $0x20] sm:$0xff] %vm218, %v659
      %668 = vst.msk [vmem:[%s200 + $0x28] sm:$0xff] %vm218, %v660
      %669 = vst.msk [vmem:[%s200 + $0x30] sm:$0xff] %vm218, %v661
      %670 = vst.msk [vmem:[%s200 + $0x38] sm:$0xff] %vm218, %v662
      %s671 = smul.u32 8, %s16
      %p672 = scmp.lt.s32.totalorder %s671, 15
      %s673 = scalar_select %p672, %s671, 15
      %s674 = smul.addr %s673, 8
      %s675 = scalar_lea.vmem %s4, %s674
      // Predicated region
      $region37: #{tpu_custom_call.1} parent=35 // pred_check
        %p676 = pneg %p123
      $region38: #{tpu_custom_call.1} parent=35 // pred_check_branch
        %678 = sbr.rel (%p676) target = $region40
      $region39: #{tpu_custom_call.1} parent=35 // pred_region
        %s679 = smul.u32 8, %s16
      $region40: #{tpu_custom_call.1} parent=35 // pred_fallthru
        _
    $region36: #{tpu_custom_call.1} parent=5 // pred_fallthru
      _
    %p680 = scmp.le.s32.totalorder 2, %s11
    // Predicated region
    $region41: #{tpu_custom_call.1} parent=5 // pred_check
      %p681 = pneg %p680
    $region42: #{tpu_custom_call.1} parent=5 // pred_check_branch
      %683 = sbr.rel (%p681) target = $region44
    $region43: #{tpu_custom_call.1} parent=5 // pred_region
      %s684 = ssub.s32 %s11, 2
      // Predicated region
      $region45: #{tpu_custom_call.1} parent=43 // pred_check
        %p685 = pneg %p129
      $region46: #{tpu_custom_call.1} parent=43 // pred_check_branch
        %687 = sbr.rel (%p685) target = $region48
      $region47: #{tpu_custom_call.1} parent=43 // pred_region
        %s688 = smul.u32 8, %s17
        %p689 = scmp.lt.s32.totalorder %s688, 15
        %s690 = scalar_select %p689, %s688, 15
        %s691 = smul.addr %s690, 8
        %s692 = scalar_lea.vmem %s4, %s691
      $region48: #{tpu_custom_call.1} parent=43 // pred_fallthru
        _
    $region44: #{tpu_custom_call.1} parent=5 // pred_fallthru
      _
  $region6: #{tpu_custom_call.1} parent=0 // loop_footer
    %s15 = sadd.s32 1, %s11
  $region7: #{tpu_custom_call.1} parent=0 // loop_footer_branch
    %10 = sbr.rel target = $region3
  $region8: #{tpu_custom_call.1} parent=0 // loop_exit
    _

// kernel: tpu_custom_call.1
$region0: #{tpu_custom_call.1}
  #allocation0 [shape = 'u32[]', space=smem, size = 0x4, offset = 0x4, fixed_abs, tag = 'smem constant byte address 0x4 - core index']
  #allocation1 [shape = 'u32[72,128]{1,0:T(1,128)}', space=vmem, size = 0x9000, scoped, tag = 'internal scratch']
  #allocation2 [shape = 'f32[1]{0:T(128)S(6)}', space=smem, size = 0x200, scoped, tag = 'scoped memory for tpu_custom_call.1']
  %s0 = inlined_call_operand.<no memory space> [shape: f32[1], index: 0, kind: input, shape index: {}]
  %s1 = inlined_call_operand.vmem [shape: f32[128,32], index: 1, kind: input, shape index: {}]
  %s2 = inlined_call_operand.vmem [shape: f32[32,32], index: 2, kind: input, shape index: {}]
  %s3 = inlined_call_operand.vmem [shape: f32[1,32], index: 3, kind: input, shape index: {}]
  %s4 = inlined_call_operand.vmem [shape: f32[128,32], index: 4, kind: output, shape index: {}]
  %s5 = sld [smem:[#allocation0]]
  $region49: #{tpu_custom_call.1} parent=0
    _
  %s7 = ssub.s32 1, %s5
  %s8 = scalar_select 0, %s7, %s5
  %9 = sst [smem:[#allocation2]] %s0
  loop: start=0, step=1, limit=4
  $region2: #{tpu_custom_call.1} parent=0 // loop_pre_header
    _
  $region3: #{tpu_custom_call.1} parent=0 // loop_header
    %s11 = sphi 0, %s15
    %p12 = scmp.ge.s32.totalorder %s11, 4
    %s19 = sphi 0, %s19
    %s21 = sphi 0, %s19
    %s22 = sphi 0, %s21
    %s36 = sphi 0, %s22
    %s42 = sphi 0, %s44
    %s45 = sphi 0, %s42
    %s46 = sphi 0, %s45
    %s62 = sphi 0, %s46
    %s66 = sphi 0, %s66
    %s68 = sphi 0, %s66
    %s69 = sphi 0, %s68
    %s83 = sphi 0, %s69
    %s87 = sphi 0, %s87
    %s89 = sphi 0, %s87
    %s90 = sphi 0, %s89
    %s104 = sphi 0, %s90
    %s110 = sphi 0, %s112
    %s113 = sphi 0, %s110
    %s114 = sphi 0, %s113
    %s130 = sphi 0, %s114
  $region4: #{tpu_custom_call.1} parent=0 // loop_header_branch
    %14 = sbr.rel (%p12) target = $region8
  $region5: #{tpu_custom_call.1} parent=0 // loop_body
    %s16 = ssub.s32 %s11, 1
    %s17 = ssub.s32 %s11, 2
    %s18 = sadd.s32 %s11, 1
    %s20 = sadd.s32 %s19, 1
    %p23 = scmp.eq.s32.totalorder %s11, 1
    %p24 = scmp.ne.s32.totalorder %s19, %s21
    %p25 = scmp.eq.s32.totalorder %s11, 0
    %p26 = por %p24, %p25
    %p27 = scmp.ne.s32.totalorder %s19, %s21
    %p28 = scmp.eq.s32.totalorder %s16, 1
    %p29 = por %p27, %p28
    %p30 = scmp.ne.s32.totalorder %s21, %s22
    %p31 = scmp.eq.s32.totalorder %s16, 0
    %p32 = por %p30, %p31
    %p33 = scmp.ne.s32.totalorder %s21, %s22
    %p34 = scmp.eq.s32.totalorder %s17, 1
    %p35 = por %p33, %p34
    %p37 = scmp.ne.s32.totalorder %s22, %s36
    %p38 = scmp.eq.s32.totalorder %s17, 0
    %p39 = por %p37, %p38
    %s40 = ssub.s32 %s11, %s18
    %p41 = scmp.eq.s32.totalorder %s40, 0
    %s43 = sadd.s32 %s42, 1
    %s44 = scalar_select %p41, %s42, %s43
    %p47 = pneg %p41
    %p48 = scmp.eq.s32.totalorder %s11, 1
    %p49 = por %p47, %p48
    %p50 = scmp.ne.s32.totalorder %s42, %s45
    %p51 = scmp.eq.s32.totalorder %s11, 0
    %p52 = por %p50, %p51
    %p53 = scmp.ne.s32.totalorder %s42, %s45
    %p54 = scmp.eq.s32.totalorder %s16, 1
    %p55 = por %p53, %p54
    %p56 = scmp.ne.s32.totalorder %s45, %s46
    %p57 = scmp.eq.s32.totalorder %s16, 0
    %p58 = por %p56, %p57
    %p59 = scmp.ne.s32.totalorder %s45, %s46
    %p60 = scmp.eq.s32.totalorder %s17, 1
    %p61 = por %p59, %p60
    %p63 = scmp.ne.s32.totalorder %s46, %s62
    %p64 = scmp.eq.s32.totalorder %s17, 0
    %p65 = por %p63, %p64
    %s67 = sadd.s32 %s66, 1
    %p70 = scmp.eq.s32.totalorder %s11, 1
    %p71 = scmp.ne.s32.totalorder %s66, %s68
    %p72 = scmp.eq.s32.totalorder %s11, 0
    %p73 = por %p71, %p72
    %p74 = scmp.ne.s32.totalorder %s66, %s68
    %p75 = scmp.eq.s32.totalorder %s16, 1
    %p76 = por %p74, %p75
    %p77 = scmp.ne.s32.totalorder %s68, %s69
    %p78 = scmp.eq.s32.totalorder %s16, 0
    %p79 = por %p77, %p78
    %p80 = scmp.ne.s32.totalorder %s68, %s69
    %p81 = scmp.eq.s32.totalorder %s17, 1
    %p82 = por %p80, %p81
    %p84 = scmp.ne.s32.totalorder %s69, %s83
    %p85 = scmp.eq.s32.totalorder %s17, 0
    %p86 = por %p84, %p85
    %s88 = sadd.s32 %s87, 1
    %p91 = scmp.eq.s32.totalorder %s11, 1
    %p92 = scmp.ne.s32.totalorder %s87, %s89
    %p93 = scmp.eq.s32.totalorder %s11, 0
    %p94 = por %p92, %p93
    %p95 = scmp.ne.s32.totalorder %s87, %s89
    %p96 = scmp.eq.s32.totalorder %s16, 1
    %p97 = por %p95, %p96
    %p98 = scmp.ne.s32.totalorder %s89, %s90
    %p99 = scmp.eq.s32.totalorder %s16, 0
    %p100 = por %p98, %p99
    %p101 = scmp.ne.s32.totalorder %s89, %s90
    %p102 = scmp.eq.s32.totalorder %s17, 1
    %p103 = por %p101, %p102
    %p105 = scmp.ne.s32.totalorder %s90, %s104
    %p106 = scmp.eq.s32.totalorder %s17, 0
    %p107 = por %p105, %p106
    %s108 = ssub.s32 %s11, %s18
    %p109 = scmp.eq.s32.totalorder %s108, 0
    %s111 = sadd.s32 %s110, 1
    %s112 = scalar_select %p109, %s110, %s111
    %p115 = pneg %p109
    %p116 = scmp.eq.s32.totalorder %s11, 1
    %p117 = por %p115, %p116
    %p118 = scmp.ne.s32.totalorder %s110, %s113
    %p119 = scmp.eq.s32.totalorder %s11, 0
    %p120 = por %p118, %p119
    %p121 = scmp.ne.s32.totalorder %s110, %s113
    %p122 = scmp.eq.s32.totalorder %s16, 1
    %p123 = por %p121, %p122
    %p124 = scmp.ne.s32.totalorder %s113, %s114
    %p125 = scmp.eq.s32.totalorder %s16, 0
    %p126 = por %p124, %p125
    %p127 = scmp.ne.s32.totalorder %s113, %s114
    %p128 = scmp.eq.s32.totalorder %s17, 1
    %p129 = por %p127, %p128
    %p131 = scmp.ne.s32.totalorder %s114, %s130
    %p132 = scmp.eq.s32.totalorder %s17, 0
    %p133 = por %p131, %p132
    %p134 = scmp.le.s32.totalorder 1, %s11
    %p135 = scmp.lt.s32.totalorder %s11, 3
    %p136 = pnand %p134, %p135
    %p137 = pneg %p136
    // Predicated region
    $region9: #{tpu_custom_call.1} parent=5 // pred_check
      _
    $region10: #{tpu_custom_call.1} parent=5 // pred_check_branch
      %139 = sbr.rel (%p136) target = $region12
    $region11: #{tpu_custom_call.1} parent=5 // pred_region
      %s140 = ssub.s32 %s11, 1
      // Predicated region
      $region13: #{tpu_custom_call.1} parent=11 // pred_check
        %p141 = pneg %p32
      $region14: #{tpu_custom_call.1} parent=11 // pred_check_branch
        %143 = sbr.rel (%p141) target = $region16
      $region15: #{tpu_custom_call.1} parent=11 // pred_region
        _
      $region16: #{tpu_custom_call.1} parent=11 // pred_fallthru
        _
      // Predicated region
      $region17: #{tpu_custom_call.1} parent=11 // pred_check
        %p144 = pneg %p79
      $region18: #{tpu_custom_call.1} parent=11 // pred_check_branch
        %146 = sbr.rel (%p144) target = $region20
      $region19: #{tpu_custom_call.1} parent=11 // pred_region
        _
      $region20: #{tpu_custom_call.1} parent=11 // pred_fallthru
        _
      // Predicated region
      $region21: #{tpu_custom_call.1} parent=11 // pred_check
        %p147 = pneg %p100
      $region22: #{tpu_custom_call.1} parent=11 // pred_check_branch
        %149 = sbr.rel (%p147) target = $region24
      $region23: #{tpu_custom_call.1} parent=11 // pred_region
        _
      $region24: #{tpu_custom_call.1} parent=11 // pred_fallthru
        _
    $region12: #{tpu_custom_call.1} parent=5 // pred_fallthru
      _
    %p150 = scmp.lt.s32.totalorder %s11, 2
    // Predicated region
    $region25: #{tpu_custom_call.1} parent=5 // pred_check
      %p151 = pneg %p150
    $region26: #{tpu_custom_call.1} parent=5 // pred_check_branch
      %153 = sbr.rel (%p151) target = $region28
    $region27: #{tpu_custom_call.1} parent=5 // pred_region
      // Predicated region
      $region29: #{tpu_custom_call.1} parent=27 // pred_check
        %p154 = pneg %p52
      $region30: #{tpu_custom_call.1} parent=27 // pred_check_branch
        %156 = sbr.rel (%p154) target = $region32
      $region31: #{tpu_custom_call.1} parent=27 // pred_region
        %s157 = smul.u32 8, %s11
        %p158 = scmp.lt.s32.totalorder %s157, 15
        %s159 = scalar_select %p158, %s157, 15
        %s160 = smul.addr %s159, 8
        %s161 = scalar_lea.vmem %s1, %s160
        %s162 = smul.u32 8, %s11
      $region32: #{tpu_custom_call.1} parent=27 // pred_fallthru
        _
    $region28: #{tpu_custom_call.1} parent=5 // pred_fallthru
      _
    %p163 = scmp.le.s32.totalorder 1, %s11
    %p164 = scmp.lt.s32.totalorder %s11, 3
    %p165 = pnand %p163, %p164
    %p166 = pneg %p165
    // Predicated region
    $region33: #{tpu_custom_call.1} parent=5 // pred_check
      _
    $region34: #{tpu_custom_call.1} parent=5 // pred_check_branch
      %168 = sbr.rel (%p165) target = $region36
    $region35: #{tpu_custom_call.1} parent=5 // pred_region
      %s169 = ssub.s32 %s11, 1
      %p170 = pneg %p32
      %p171 = pneg %p29
      %s172 = smul.u32 8, %s16
      %p173 = scmp.lt.s32.totalorder %s172, 15
      %s174 = scalar_select %p173, %s172, 15
      %s175 = smul.addr %s174, 8
      %s176 = scalar_lea.vmem %s1, %s175
      %p177 = pneg %p58
      %p178 = pneg %p55
      %p179 = pneg %p79
      %p180 = pneg %p76
      %p181 = pneg %p100
      %p182 = pneg %p97
      %p183 = pneg %p126
      %p184 = pneg %p123
      %s185 = smul.u32 8, %s16
      %p186 = scmp.lt.s32.totalorder %s185, 15
      %s187 = scalar_select %p186, %s185, 15
      %s188 = smul.addr %s187, 8
      %s189 = scalar_lea.vmem %s4, %s188
      %s190 = smul.u32 8, %s16
      %p191 = scmp.lt.s32.totalorder %s190, 15
      %s192 = scalar_select %p191, %s190, 15
      %s193 = smul.addr %s192, 8
      %s194 = scalar_lea.vmem %s1, %s193
      %s195 = smul.u32 8, %s16
      %s196 = smul.u32 8, %s16
      %p197 = scmp.lt.s32.totalorder %s196, 15
      %s198 = scalar_select %p197, %s196, 15
      %s199 = smul.addr %s198, 8
      %s200 = scalar_lea.vmem %s4, %s199
      %s201 = smul.u32 8, %s16
      %v202 = vld [vmem:[%s194] sm:$0xff]
      %v203 = vld [vmem:[%s194 + $0x8] sm:$0xff]
      %v204 = vld [vmem:[%s194 + $0x10] sm:$0xff]
      %v205 = vld [vmem:[%s194 + $0x18] sm:$0xff]
      %v206 = vld [vmem:[%s194 + $0x20] sm:$0xff]
      %v207 = vld [vmem:[%s194 + $0x28] sm:$0xff]
      %v208 = vld [vmem:[%s194 + $0x30] sm:$0xff]
      %v209 = vld [vmem:[%s194 + $0x38] sm:$0xff]
      %v210 = vld [vmem:[%s2] sm:$0xff]
      %v211 = vld [vmem:[%s2 + $0x8] sm:$0xff]
      %v212 = vld [vmem:[%s2 + $0x10] sm:$0xff]
      %v213 = vld [vmem:[%s2 + $0x18] sm:$0xff]
      %v214 = vld [vmem:[%s3] sm:$0x1]
      %v216 = vperm.slane %v214, 0
      %vm218 = vcmask 261120
      %v220 = vsel %vm218, %v202, 0
      %v223 = vsel %vm218, %v203, 0
      %v226 = vsel %vm218, %v204, 0
      %v229 = vsel %vm218, %v205, 0
      %v232 = vsel %vm218, %v206, 0
      %v235 = vsel %vm218, %v207, 0
      %v238 = vsel %vm218, %v208, 0
      %v241 = vsel %vm218, %v209, 0
      %243 = vmatpush.msra.mxu0 0.0
      %244 = vmatpush.msra.mxu0 0.0
      %245 = vmatpush.msra.mxu0 0.0
      %246 = vmatpush.msra.mxu0 0.0
      %247 = vmatpush.msra.mxu0 0.0
      %248 = vmatpush.msra.mxu0 0.0
      %249 = vmatpush.msra.mxu0 0.0
      %250 = vmatpush.msra.mxu0 0.0
      %251 = vmatpush.msra.mxu0 0.0
      %252 = vmatpush.msra.mxu0 0.0
      %253 = vmatpush.msra.mxu0 0.0
      %254 = vmatpush.msra.mxu0 0.0
      %v255 = vand.u32 %v213, 4294901760
      %256 = vmatpush.msra.mxu0 %v255
      %v257 = vand.u32 %v212, 4294901760
      %258 = vmatpush.msra.mxu0 %v257
      %v259 = vand.u32 %v211, 4294901760
      %260 = vmatpush.msra.mxu0 %v259
      %v261 = vand.u32 %v210, 4294901760
      %262 = vmatpush.msra.mxu0 %v261
      %v263 = vand.u32 %v220, 4294901760
      %v264 = vsub.f32 %v220, %v263
      %v265 = vand.u32 %v264, 4294901760
      %v266 = vsub.f32 %v264, %v265
      %v267 = vand.u32 %v266, 4294901760
      %268 = vmatmul.f32.gmra.mxu0 %v267
      %v269 = vpop.f32.mrf.mxu0
      %v270 = vadd.f32 %v216, %v269
      %v271 = vand.u32 %v223, 4294901760
      %v272 = vsub.f32 %v223, %v271
      %v273 = vand.u32 %v272, 4294901760
      %v274 = vsub.f32 %v272, %v273
      %v275 = vand.u32 %v274, 4294901760
      %276 = vmatmul.f32.gmra.mxu0 %v275
      %v277 = vpop.f32.mrf.mxu0
      %v278 = vadd.f32 %v216, %v277
      %v279 = vand.u32 %v226, 4294901760
      %v280 = vsub.f32 %v226, %v279
      %v281 = vand.u32 %v280, 4294901760
      %v282 = vsub.f32 %v280, %v281
      %v283 = vand.u32 %v282, 4294901760
      %284 = vmatmul.f32.gmra.mxu0 %v283
      %v285 = vpop.f32.mrf.mxu0
      %v286 = vadd.f32 %v216, %v285
      %v287 = vand.u32 %v229, 4294901760
      %v288 = vsub.f32 %v229, %v287
      %v289 = vand.u32 %v288, 4294901760
      %v290 = vsub.f32 %v288, %v289
      %v291 = vand.u32 %v290, 4294901760
      %292 = vmatmul.f32.gmra.mxu0 %v291
      %v293 = vpop.f32.mrf.mxu0
      %v294 = vadd.f32 %v216, %v293
      %v295 = vand.u32 %v232, 4294901760
      %v296 = vsub.f32 %v232, %v295
      %v297 = vand.u32 %v296, 4294901760
      %v298 = vsub.f32 %v296, %v297
      %v299 = vand.u32 %v298, 4294901760
      %300 = vmatmul.f32.gmra.mxu0 %v299
      %v301 = vpop.f32.mrf.mxu0
      %v302 = vadd.f32 %v216, %v301
      %v303 = vand.u32 %v235, 4294901760
      %v304 = vsub.f32 %v235, %v303
      %v305 = vand.u32 %v304, 4294901760
      %v306 = vsub.f32 %v304, %v305
      %v307 = vand.u32 %v306, 4294901760
      %308 = vmatmul.f32.gmra.mxu0 %v307
      %v309 = vpop.f32.mrf.mxu0
      %v310 = vadd.f32 %v216, %v309
      %v311 = vand.u32 %v238, 4294901760
      %v312 = vsub.f32 %v238, %v311
      %v313 = vand.u32 %v312, 4294901760
      %v314 = vsub.f32 %v312, %v313
      %v315 = vand.u32 %v314, 4294901760
      %316 = vmatmul.f32.gmra.mxu0 %v315
      %v317 = vpop.f32.mrf.mxu0
      %v318 = vadd.f32 %v216, %v317
      %v319 = vand.u32 %v241, 4294901760
      %v320 = vsub.f32 %v241, %v319
      %v321 = vand.u32 %v320, 4294901760
      %v322 = vsub.f32 %v320, %v321
      %v323 = vand.u32 %v322, 4294901760
      %324 = vmatmul.f32.gmra.mxu0 %v323
      %v325 = vpop.f32.mrf.mxu0
      %v326 = vadd.f32 %v216, %v325
      %327 = vdwg.mxu0
      %328 = vmatpush.msra.mxu0 0.0
      %329 = vmatpush.msra.mxu0 0.0
      %330 = vmatpush.msra.mxu0 0.0
      %331 = vmatpush.msra.mxu0 0.0
      %332 = vmatpush.msra.mxu0 0.0
      %333 = vmatpush.msra.mxu0 0.0
      %334 = vmatpush.msra.mxu0 0.0
      %335 = vmatpush.msra.mxu0 0.0
      %336 = vmatpush.msra.mxu0 0.0
      %337 = vmatpush.msra.mxu0 0.0
      %338 = vmatpush.msra.mxu0 0.0
      %339 = vmatpush.msra.mxu0 0.0
      %v340 = vand.u32 %v213, 4294901760
      %v341 = vsub.f32 %v213, %v340
      %v342 = vand.u32 %v341, 4294901760
      %v343 = vsub.f32 %v341, %v342
      %v344 = vand.u32 %v343, 4294901760
      %345 = vmatpush.msra.mxu0 %v344
      %v346 = vand.u32 %v212, 4294901760
      %v347 = vsub.f32 %v212, %v346
      %v348 = vand.u32 %v347, 4294901760
      %v349 = vsub.f32 %v347, %v348
      %v350 = vand.u32 %v349, 4294901760
      %351 = vmatpush.msra.mxu0 %v350
      %v352 = vand.u32 %v211, 4294901760
      %v353 = vsub.f32 %v211, %v352
      %v354 = vand.u32 %v353, 4294901760
      %v355 = vsub.f32 %v353, %v354
      %v356 = vand.u32 %v355, 4294901760
      %357 = vmatpush.msra.mxu0 %v356
      %v358 = vand.u32 %v210, 4294901760
      %v359 = vsub.f32 %v210, %v358
      %v360 = vand.u32 %v359, 4294901760
      %v361 = vsub.f32 %v359, %v360
      %v362 = vand.u32 %v361, 4294901760
      %363 = vmatpush.msra.mxu0 %v362
      %v364 = vand.u32 %v220, 4294901760
      %365 = vmatmul.f32.gmra.mxu0 %v364
      %v366 = vpop.f32.mrf.mxu0
      %v367 = vadd.f32 %v270, %v366
      %v368 = vand.u32 %v223, 4294901760
      %369 = vmatmul.f32.gmra.mxu0 %v368
      %v370 = vpop.f32.mrf.mxu0
      %v371 = vadd.f32 %v278, %v370
      %v372 = vand.u32 %v226, 4294901760
      %373 = vmatmul.f32.gmra.mxu0 %v372
      %v374 = vpop.f32.mrf.mxu0
      %v375 = vadd.f32 %v286, %v374
      %v376 = vand.u32 %v229, 4294901760
      %377 = vmatmul.f32.gmra.mxu0 %v376
      %v378 = vpop.f32.mrf.mxu0
      %v379 = vadd.f32 %v294, %v378
      %v380 = vand.u32 %v232, 4294901760
      %381 = vmatmul.f32.gmra.mxu0 %v380
      %v382 = vpop.f32.mrf.mxu0
      %v383 = vadd.f32 %v302, %v382
      %v384 = vand.u32 %v235, 4294901760
      %385 = vmatmul.f32.gmra.mxu0 %v384
      %v386 = vpop.f32.mrf.mxu0
      %v387 = vadd.f32 %v310, %v386
      %v388 = vand.u32 %v238, 4294901760
      %389 = vmatmul.f32.gmra.mxu0 %v388
      %v390 = vpop.f32.mrf.mxu0
      %v391 = vadd.f32 %v318, %v390
      %v392 = vand.u32 %v241, 4294901760
      %393 = vmatmul.f32.gmra.mxu0 %v392
      %v394 = vpop.f32.mrf.mxu0
      %v395 = vadd.f32 %v326, %v394
      %396 = vdwg.mxu0
      %397 = vmatpush.msra.mxu0 0.0
      %398 = vmatpush.msra.mxu0 0.0
      %399 = vmatpush.msra.mxu0 0.0
      %400 = vmatpush.msra.mxu0 0.0
      %401 = vmatpush.msra.mxu0 0.0
      %402 = vmatpush.msra.mxu0 0.0
      %403 = vmatpush.msra.mxu0 0.0
      %404 = vmatpush.msra.mxu0 0.0
      %405 = vmatpush.msra.mxu0 0.0
      %406 = vmatpush.msra.mxu0 0.0
      %407 = vmatpush.msra.mxu0 0.0
      %408 = vmatpush.msra.mxu0 0.0
      %v409 = vand.u32 %v213, 4294901760
      %v410 = vsub.f32 %v213, %v409
      %411 = vmatpush.msra.mxu0 %v410
      %v412 = vand.u32 %v212, 4294901760
      %v413 = vsub.f32 %v212, %v412
      %414 = vmatpush.msra.mxu0 %v413
      %v415 = vand.u32 %v211, 4294901760
      %v416 = vsub.f32 %v211, %v415
      %417 = vmatpush.msra.mxu0 %v416
      %v418 = vand.u32 %v210, 4294901760
      %v419 = vsub.f32 %v210, %v418
      %420 = vmatpush.msra.mxu0 %v419
      %v421 = vand.u32 %v220, 4294901760
      %v422 = vsub.f32 %v220, %v421
      %423 = vmatmul.f32.gmra.mxu0 %v422
      %v424 = vpop.f32.mrf.mxu0
      %v425 = vadd.f32 %v367, %v424
      %v426 = vand.u32 %v223, 4294901760
      %v427 = vsub.f32 %v223, %v426
      %428 = vmatmul.f32.gmra.mxu0 %v427
      %v429 = vpop.f32.mrf.mxu0
      %v430 = vadd.f32 %v371, %v429
      %v431 = vand.u32 %v226, 4294901760
      %v432 = vsub.f32 %v226, %v431
      %433 = vmatmul.f32.gmra.mxu0 %v432
      %v434 = vpop.f32.mrf.mxu0
      %v435 = vadd.f32 %v375, %v434
      %v436 = vand.u32 %v229, 4294901760
      %v437 = vsub.f32 %v229, %v436
      %438 = vmatmul.f32.gmra.mxu0 %v437
      %v439 = vpop.f32.mrf.mxu0
      %v440 = vadd.f32 %v379, %v439
      %v441 = vand.u32 %v232, 4294901760
      %v442 = vsub.f32 %v232, %v441
      %443 = vmatmul.f32.gmra.mxu0 %v442
      %v444 = vpop.f32.mrf.mxu0
      %v445 = vadd.f32 %v383, %v444
      %v446 = vand.u32 %v235, 4294901760
      %v447 = vsub.f32 %v235, %v446
      %448 = vmatmul.f32.gmra.mxu0 %v447
      %v449 = vpop.f32.mrf.mxu0
      %v450 = vadd.f32 %v387, %v449
      %v451 = vand.u32 %v238, 4294901760
      %v452 = vsub.f32 %v238, %v451
      %453 = vmatmul.f32.gmra.mxu0 %v452
      %v454 = vpop.f32.mrf.mxu0
      %v455 = vadd.f32 %v391, %v454
      %v456 = vand.u32 %v241, 4294901760
      %v457 = vsub.f32 %v241, %v456
      %458 = vmatmul.f32.gmra.mxu0 %v457
      %v459 = vpop.f32.mrf.mxu0
      %v460 = vadd.f32 %v395, %v459
      %461 = vdwg.mxu0
      %462 = vmatpush.msra.mxu0 0.0
      %463 = vmatpush.msra.mxu0 0.0
      %464 = vmatpush.msra.mxu0 0.0
      %465 = vmatpush.msra.mxu0 0.0
      %466 = vmatpush.msra.mxu0 0.0
      %467 = vmatpush.msra.mxu0 0.0
      %468 = vmatpush.msra.mxu0 0.0
      %469 = vmatpush.msra.mxu0 0.0
      %470 = vmatpush.msra.mxu0 0.0
      %471 = vmatpush.msra.mxu0 0.0
      %472 = vmatpush.msra.mxu0 0.0
      %473 = vmatpush.msra.mxu0 0.0
      %v474 = vand.u32 %v213, 4294901760
      %475 = vmatpush.msra.mxu0 %v474
      %v476 = vand.u32 %v212, 4294901760
      %477 = vmatpush.msra.mxu0 %v476
      %v478 = vand.u32 %v211, 4294901760
      %479 = vmatpush.msra.mxu0 %v478
      %v480 = vand.u32 %v210, 4294901760
      %481 = vmatpush.msra.mxu0 %v480
      %v482 = vand.u32 %v220, 4294901760
      %v483 = vsub.f32 %v220, %v482
      %v484 = vand.u32 %v483, 4294901760
      %485 = vmatmul.f32.gmra.mxu0 %v484
      %v486 = vpop.f32.mrf.mxu0
      %v487 = vadd.f32 %v425, %v486
      %v488 = vand.u32 %v223, 4294901760
      %v489 = vsub.f32 %v223, %v488
      %v490 = vand.u32 %v489, 4294901760
      %491 = vmatmul.f32.gmra.mxu0 %v490
      %v492 = vpop.f32.mrf.mxu0
      %v493 = vadd.f32 %v430, %v492
      %v494 = vand.u32 %v226, 4294901760
      %v495 = vsub.f32 %v226, %v494
      %v496 = vand.u32 %v495, 4294901760
      %497 = vmatmul.f32.gmra.mxu0 %v496
      %v498 = vpop.f32.mrf.mxu0
      %v499 = vadd.f32 %v435, %v498
      %v500 = vand.u32 %v229, 4294901760
      %v501 = vsub.f32 %v229, %v500
      %v502 = vand.u32 %v501, 4294901760
      %503 = vmatmul.f32.gmra.mxu0 %v502
      %v504 = vpop.f32.mrf.mxu0
      %v505 = vadd.f32 %v440, %v504
      %v506 = vand.u32 %v232, 4294901760
      %v507 = vsub.f32 %v232, %v506
      %v508 = vand.u32 %v507, 4294901760
      %509 = vmatmul.f32.gmra.mxu0 %v508
      %v510 = vpop.f32.mrf.mxu0
      %v511 = vadd.f32 %v445, %v510
      %v512 = vand.u32 %v235, 4294901760
      %v513 = vsub.f32 %v235, %v512
      %v514 = vand.u32 %v513, 4294901760
      %515 = vmatmul.f32.gmra.mxu0 %v514
      %v516 = vpop.f32.mrf.mxu0
      %v517 = vadd.f32 %v450, %v516
      %v518 = vand.u32 %v238, 4294901760
      %v519 = vsub.f32 %v238, %v518
      %v520 = vand.u32 %v519, 4294901760
      %521 = vmatmul.f32.gmra.mxu0 %v520
      %v522 = vpop.f32.mrf.mxu0
      %v523 = vadd.f32 %v455, %v522
      %v524 = vand.u32 %v241, 4294901760
      %v525 = vsub.f32 %v241, %v524
      %v526 = vand.u32 %v525, 4294901760
      %527 = vmatmul.f32.gmra.mxu0 %v526
      %v528 = vpop.f32.mrf.mxu0
      %v529 = vadd.f32 %v460, %v528
      %530 = vdwg.mxu0
      %531 = vmatpush.msra.mxu0 0.0
      %532 = vmatpush.msra.mxu0 0.0
      %533 = vmatpush.msra.mxu0 0.0
      %534 = vmatpush.msra.mxu0 0.0
      %535 = vmatpush.msra.mxu0 0.0
      %536 = vmatpush.msra.mxu0 0.0
      %537 = vmatpush.msra.mxu0 0.0
      %538 = vmatpush.msra.mxu0 0.0
      %539 = vmatpush.msra.mxu0 0.0
      %540 = vmatpush.msra.mxu0 0.0
      %541 = vmatpush.msra.mxu0 0.0
      %542 = vmatpush.msra.mxu0 0.0
      %v543 = vand.u32 %v213, 4294901760
      %v544 = vsub.f32 %v213, %v543
      %v545 = vand.u32 %v544, 4294901760
      %546 = vmatpush.msra.mxu0 %v545
      %v547 = vand.u32 %v212, 4294901760
      %v548 = vsub.f32 %v212, %v547
      %v549 = vand.u32 %v548, 4294901760
      %550 = vmatpush.msra.mxu0 %v549
      %v551 = vand.u32 %v211, 4294901760
      %v552 = vsub.f32 %v211, %v551
      %v553 = vand.u32 %v552, 4294901760
      %554 = vmatpush.msra.mxu0 %v553
      %v555 = vand.u32 %v210, 4294901760
      %v556 = vsub.f32 %v210, %v555
      %v557 = vand.u32 %v556, 4294901760
      %558 = vmatpush.msra.mxu0 %v557
      %v559 = vand.u32 %v220, 4294901760
      %560 = vmatmul.f32.gmra.mxu0 %v559
      %v561 = vpop.f32.mrf.mxu0
      %v562 = vadd.f32 %v487, %v561
      %v563 = vand.u32 %v223, 4294901760
      %564 = vmatmul.f32.gmra.mxu0 %v563
      %v565 = vpop.f32.mrf.mxu0
      %v566 = vadd.f32 %v493, %v565
      %v567 = vand.u32 %v226, 4294901760
      %568 = vmatmul.f32.gmra.mxu0 %v567
      %v569 = vpop.f32.mrf.mxu0
      %v570 = vadd.f32 %v499, %v569
      %v571 = vand.u32 %v229, 4294901760
      %572 = vmatmul.f32.gmra.mxu0 %v571
      %v573 = vpop.f32.mrf.mxu0
      %v574 = vadd.f32 %v505, %v573
      %v575 = vand.u32 %v232, 4294901760
      %576 = vmatmul.f32.gmra.mxu0 %v575
      %v577 = vpop.f32.mrf.mxu0
      %v578 = vadd.f32 %v511, %v577
      %v579 = vand.u32 %v235, 4294901760
      %580 = vmatmul.f32.gmra.mxu0 %v579
      %v581 = vpop.f32.mrf.mxu0
      %v582 = vadd.f32 %v517, %v581
      %v583 = vand.u32 %v238, 4294901760
      %584 = vmatmul.f32.gmra.mxu0 %v583
      %v585 = vpop.f32.mrf.mxu0
      %v586 = vadd.f32 %v523, %v585
      %v587 = vand.u32 %v241, 4294901760
      %588 = vmatmul.f32.gmra.mxu0 %v587
      %v589 = vpop.f32.mrf.mxu0
      %v590 = vadd.f32 %v529, %v589
      %591 = vdwg.mxu0
      %592 = vmatpush.msra.mxu0 0.0
      %593 = vmatpush.msra.mxu0 0.0
      %594 = vmatpush.msra.mxu0 0.0
      %595 = vmatpush.msra.mxu0 0.0
      %596 = vmatpush.msra.mxu0 0.0
      %597 = vmatpush.msra.mxu0 0.0
      %598 = vmatpush.msra.mxu0 0.0
      %599 = vmatpush.msra.mxu0 0.0
      %600 = vmatpush.msra.mxu0 0.0
      %601 = vmatpush.msra.mxu0 0.0
      %602 = vmatpush.msra.mxu0 0.0
      %603 = vmatpush.msra.mxu0 0.0
      %v604 = vand.u32 %v213, 4294901760
      %605 = vmatpush.msra.mxu0 %v604
      %v606 = vand.u32 %v212, 4294901760
      %607 = vmatpush.msra.mxu0 %v606
      %v608 = vand.u32 %v211, 4294901760
      %609 = vmatpush.msra.mxu0 %v608
      %v610 = vand.u32 %v210, 4294901760
      %611 = vmatpush.msra.mxu0 %v610
      %v612 = vand.u32 %v220, 4294901760
      %613 = vmatmul.f32.gmra.mxu0 %v612
      %v614 = vpop.f32.mrf.mxu0
      %v615 = vadd.f32 %v562, %v614
      %v616 = vand.u32 %v223, 4294901760
      %617 = vmatmul.f32.gmra.mxu0 %v616
      %v618 = vpop.f32.mrf.mxu0
      %v619 = vadd.f32 %v566, %v618
      %v620 = vand.u32 %v226, 4294901760
      %621 = vmatmul.f32.gmra.mxu0 %v620
      %v622 = vpop.f32.mrf.mxu0
      %v623 = vadd.f32 %v570, %v622
      %v624 = vand.u32 %v229, 4294901760
      %625 = vmatmul.f32.gmra.mxu0 %v624
      %v626 = vpop.f32.mrf.mxu0
      %v627 = vadd.f32 %v574, %v626
      %v628 = vand.u32 %v232, 4294901760
      %629 = vmatmul.f32.gmra.mxu0 %v628
      %v630 = vpop.f32.mrf.mxu0
      %v631 = vadd.f32 %v578, %v630
      %v632 = vand.u32 %v235, 4294901760
      %633 = vmatmul.f32.gmra.mxu0 %v632
      %v634 = vpop.f32.mrf.mxu0
      %v635 = vadd.f32 %v582, %v634
      %v636 = vand.u32 %v238, 4294901760
      %637 = vmatmul.f32.gmra.mxu0 %v636
      %v638 = vpop.f32.mrf.mxu0
      %v639 = vadd.f32 %v586, %v638
      %v640 = vand.u32 %v241, 4294901760
      %641 = vmatmul.f32.gmra.mxu0 %v640
      %v642 = vpop.f32.mrf.mxu0
      %v643 = vadd.f32 %v590, %v642
      %644 = vdwg.mxu0
      %s645 = sld [smem:[#allocation2]]
      %v646 = vstv %s645
      %v647 = vmul.f32 %v646, %v615
      %v648 = vmul.f32 %v646, %v619
      %v649 = vmul.f32 %v646, %v623
      %v650 = vmul.f32 %v646, %v627
      %v651 = vmul.f32 %v646, %v631
      %v652 = vmul.f32 %v646, %v635
      %v653 = vmul.f32 %v646, %v639
      %v654 = vmul.f32 %v646, %v643
      %v655 = vadd.f32 %v202, %v647
      %v656 = vadd.f32 %v203, %v648
      %v657 = vadd.f32 %v204, %v649
      %v658 = vadd.f32 %v205, %v650
      %v659 = vadd.f32 %v206, %v651
      %v660 = vadd.f32 %v207, %v652
      %v661 = vadd.f32 %v208, %v653
      %v662 = vadd.f32 %v209, %v654
      %663 = vst.msk [vmem:[%s200] sm:$0xff] %vm218, %v655
      %664 = vst.msk [vmem:[%s200 + $0x8] sm:$0xff] %vm218, %v656
      %665 = vst.msk [vmem:[%s200 + $0x10] sm:$0xff] %vm218, %v657
      %666 = vst.msk [vmem:[%s200 + $0x18] sm:$0xff] %vm218, %v658
      %667 = vst.msk [vmem:[%s200 + $0x20] sm:$0xff] %vm218, %v659
      %668 = vst.msk [vmem:[%s200 + $0x28] sm:$0xff] %vm218, %v660
      %669 = vst.msk [vmem:[%s200 + $0x30] sm:$0xff] %vm218, %v661
      %670 = vst.msk [vmem:[%s200 + $0x38] sm:$0xff] %vm218, %v662
      %s671 = smul.u32 8, %s16
      %p672 = scmp.lt.s32.totalorder %s671, 15
      %s673 = scalar_select %p672, %s671, 15
      %s674 = smul.addr %s673, 8
      %s675 = scalar_lea.vmem %s4, %s674
      // Predicated region
      $region37: #{tpu_custom_call.1} parent=35 // pred_check
        %p676 = pneg %p123
      $region38: #{tpu_custom_call.1} parent=35 // pred_check_branch
        %678 = sbr.rel (%p676) target = $region40
      $region39: #{tpu_custom_call.1} parent=35 // pred_region
        %s679 = smul.u32 8, %s16
      $region40: #{tpu_custom_call.1} parent=35 // pred_fallthru
        _
    $region36: #{tpu_custom_call.1} parent=5 // pred_fallthru
      _
    %p680 = scmp.le.s32.totalorder 2, %s11
    // Predicated region
    $region41: #{tpu_custom_call.1} parent=5 // pred_check
      %p681 = pneg %p680
    $region42: #{tpu_custom_call.1} parent=5 // pred_check_branch
      %683 = sbr.rel (%p681) target = $region44
    $region43: #{tpu_custom_call.1} parent=5 // pred_region
      %s684 = ssub.s32 %s11, 2
      // Predicated region
      $region45: #{tpu_custom_call.1} parent=43 // pred_check
        %p685 = pneg %p129
      $region46: #{tpu_custom_call.1} parent=43 // pred_check_branch
        %687 = sbr.rel (%p685) target = $region48
      $region47: #{tpu_custom_call.1} parent=43 // pred_region
        %s688 = smul.u32 8, %s17
        %p689 = scmp.lt.s32.totalorder %s688, 15
        %s690 = scalar_select %p689, %s688, 15
        %s691 = smul.addr %s690, 8
        %s692 = scalar_lea.vmem %s4, %s691
      $region48: #{tpu_custom_call.1} parent=43 // pred_fallthru
        _
    $region44: #{tpu_custom_call.1} parent=5 // pred_fallthru
      _
  $region6: #{tpu_custom_call.1} parent=0 // loop_footer
    %s15 = sadd.s32 1, %s11
  $region7: #{tpu_custom_call.1} parent=0 // loop_footer_branch
    %10 = sbr.rel target = $region3
  $region8: #{tpu_custom_call.1} parent=0 // loop_exit
    _

</llo_original>
